<compile_context>
chip_gen: v7x
topology: tpu7x:2x2x1
jax: 0.10.0
libtpu: 0.0.40
codegen_flags: <defaults>
</compile_context>

<pallas_src>
import functools

import jax
import jax.numpy as jnp
from jax import lax
from jax.experimental import pallas as pl
from jax.experimental.pallas import tpu as pltpu


def _neural_astar_kernel(start_ref, goal_ref, h_ref, h_smem_ref, g0_ref, wadj_ref,
                         hist_out_ref, path_out_ref,
                         *, n, g_ratio, t_max):
    N = n
    f32 = jnp.float32
    lane = lax.broadcasted_iota(jnp.int32, (1, N), 1)

    si = start_ref[0]
    gi = goal_ref[0]

    h = h_ref[...]                                   # (1, N) predicted cost map
    open0 = (lane == si).astype(f32)
    hist0 = jnp.zeros((1, N), f32)
    g0 = g0_ref[...]                                 # weighted_adj[start_index] (cleaned)
    parents0 = jnp.full((1, N), gi, dtype=jnp.int32)

    # ------------------- differentiable A* main loop (forward value) -------------------
    # Node selection: the forward value of the straight-through softmax is the one-hot
    # of argmax(exp(-f/sqrt(N)) * open) == first argmin of f over the open set, computed
    # directly (no exp/divide, no redundant argmax / goal-dot reductions).
    # Degenerate case (open set empties before goal / Tmax): the reference softmax is
    # 0/0 (undefined); here node 0 keeps being selected — outputs stay well-formed.
    def cond_fn(carry):
        t, _open_m, _hist, _g, _parents, done = carry
        return jnp.logical_and(t < t_max, done == 0)

    def body_fn(carry):
        t, open_m, hist, g, parents, _done = carry

        f = g_ratio * g + (1.0 - g_ratio) * h
        f_open = jnp.where(open_m > 0.5, f, jnp.inf)
        f_min = jnp.min(f_open)                                   # XLU reduce #1
        ind = jnp.min(jnp.where(f_open <= f_min, lane, N - 1))    # XLU reduce #2 (first argmin)
        solved = (ind == gi).astype(jnp.int32)                    # dist_to_goal >= 1e-8

        sel = lane == ind                                         # selected-node one-hot mask
        open2 = jnp.where(sel, 0.0, open_m)                       # clamp(open - snm, 0, 1)
        hist2 = jnp.where(sel, 1.0, hist)                         # clamp(hist + snm, 0, 1)

        # g[new_parents] recovered as a scalar from f_min and h[ind] (SMEM lookup):
        # f_min == g_ratio*g[ind] + (1-g_ratio)*h[ind] exactly as computed above.
        # (tiny fp reassociation drift vs. selecting g[ind] with a third reduction)
        if g_ratio != 0.0:
            g_np = (f_min - (1.0 - g_ratio) * h_smem_ref[ind]) * (1.0 / g_ratio)
        else:
            g_np = jnp.sum(jnp.where(sel, g, 0.0))                # best-first fallback

        # one-hot @ adj == row gather; neighbor mask derived from the weighted row
        # (non-edges/diagonal are exactly 0 after wrapper-side cleanup+masking).
        wrow = wadj_ref[pl.ds(ind, 1), :]                         # weighted_adj[new_parents]
        closed = (1.0 - open2) * (1.0 - hist2)
        neighbor = (wrow > 0.0).astype(f32) * closed
        g2 = g_np + wrow
        idxv = (closed + open2 * (g > g2).astype(f32)) * neighbor  # exact {0,1}

        upd = idxv > 0.5
        g_new = jnp.where(upd, g2, g)
        open3 = jnp.maximum(open2, idxv)                          # clamp(open + idx, 0, 1)
        parents_new = jnp.where(upd, ind, parents)                # int32 throughout

        return (t + 1, open3, hist2, g_new, parents_new, solved)

    carry0 = (jnp.int32(0), open0, hist0, g0, parents0, jnp.int32(0))
    t_steps, _open_f, hist_f, _g_f, parents_f, _done_f = lax.while_loop(
        cond_fn, body_fn, carry0)

    # Reference loop variable `t` at exit == (#steps executed) - 1 (break at end of body),
    # both when the goal is found and when Tmax is exhausted.
    t_final = jnp.maximum(t_steps - 1, 0)

    # ------------------------------- backtrack(start, goal, parents, t) -----------------
    goal_onehot = (lane == gi).astype(jnp.int32)
    path0 = goal_onehot
    loc0 = jnp.sum(parents_f * goal_onehot)                       # parents[goal_index]

    def bt_cond(carry):
        i, _path, _loc = carry
        return i < t_final

    def bt_body(carry):
        i, path, loc = carry
        hit = lane == loc
        path2 = jnp.where(hit, 1, path)                           # path_maps[loc] = 1
        loc2 = jnp.sum(jnp.where(hit, parents_f, 0))              # loc = parents[loc]
        return (i + 1, path2, loc2)

    _, path_f, _ = lax.while_loop(bt_cond, bt_body, (jnp.int32(0), path0, loc0))

    hist_out_ref[...] = hist_f
    path_out_ref[...] = path_f


def heuristic_neural_astar(start_index, goal_index, nodes, adj, weighted_adj,
                           w1, b1, w2, b2, *, g_ratio=0.5, Tmax=0.25):
    """Training-mode forward: returns (histories, path_maps) like the PyTorch module."""
    N, C = nodes.shape
    E = w1.shape[0]
    t_max = int(Tmax * N)                    # training: Tmax * num_nodes

    f32 = jnp.float32
    nodes_t = jnp.asarray(nodes, f32).T                  # (C, N)
    w1f = jnp.asarray(w1, f32)
    b1c = jnp.asarray(b1, f32).reshape(E, 1)
    w2r = jnp.asarray(w2, f32).reshape(1, E)
    b2c = jnp.asarray(b2, f32).reshape(1, 1)

    # --- encoder (Explorer), hoisted out of the kernel (M=1/K=2 matmuls, one-shot) ---
    # TODO(synk): Explorer class is not defined in the reference source; implemented
    # here as a deterministic Linear-ReLU-Linear MLP over node features
    # (edge_idx / loop / labels arguments have no defined semantics and are unused).
    hid = jnp.maximum(jnp.dot(w1f, nodes_t) + b1c, 0.0)  # (E, N)
    h = jnp.dot(w2r, hid) + b2c                          # (1, N) predicted cost map

    # Reference adjacency cleanup, fused in XLA (no (N,N) scratch copies in the kernel).
    diag = jnp.eye(N, dtype=bool)
    adj_c = jnp.where(diag, 0.0, jnp.asarray(adj, f32))              # adj.fill_diagonal_(0)
    w = jnp.asarray(weighted_adj, f32)
    w = jnp.where(w == jnp.inf, 0.0, w)                              # weighted_adj[inf] = 0
    wadj_c = jnp.where(diag, 0.0, w)                                 # fill_diagonal_(0)

    # Initial g = weighted_adj[start_index] (reference-cleaned row, not adj-masked).
    g0 = wadj_c[start_index][None, :]                                # (1, N)

    # Single resident (N,N) matrix: weighted adjacency masked by binary adjacency.
    # The kernel derives the neighbor mask as (row > 0); this assumes every real edge
    # has strictly positive weight after cleanup (true for Euclidean edge weights).
    # TODO(synk): a zero-weight edge in the general case would be dropped by this encoding.
    wadj_kernel = jnp.where(adj_c > 0, wadj_c, 0.0)

    start = jnp.asarray([start_index], dtype=jnp.int32)
    goal = jnp.asarray([goal_index], dtype=jnp.int32)

    kernel = functools.partial(_neural_astar_kernel, n=N, g_ratio=float(g_ratio),
                               t_max=t_max)
    vmem = pl.BlockSpec(memory_space=pltpu.MemorySpace.VMEM)
    smem = pl.BlockSpec(memory_space=pltpu.MemorySpace.SMEM)

    # Generation-aware VMEM budget: one (N,N) f32 matrix + O(N) state with 2x headroom,
    # capped at 85% of the physical VMEM (v7x: 64 MiB, v5e/v6e: 128 MiB).
    try:
        cap = int(getattr(pltpu.get_tpu_info(), "vmem_capacity_bytes", 64 * 1024 * 1024))
    except Exception:
        cap = 64 * 1024 * 1024
    resident_bytes = 4 * (N * N + 6 * N + 64)
    vmem_limit = int(min(int(0.85 * cap), max(4 * 1024 * 1024, 2 * resident_bytes)))

    hist, path = pl.pallas_call(
        kernel,
        out_shape=(jax.ShapeDtypeStruct((1, N), jnp.float32),
                   jax.ShapeDtypeStruct((1, N), jnp.int32)),
        in_specs=[smem, smem, vmem, smem, vmem, vmem],
        out_specs=(vmem, vmem),
        compiler_params=pltpu.CompilerParams(vmem_limit_bytes=vmem_limit),
    )(start, goal, h, h.reshape(N), g0, wadj_kernel)
    return hist[0], path[0]


if __name__ == "__main__":
    key = jax.random.PRNGKey(0)
    N, C, E = 128, 2, 32          # nodes, config_size, (small) embed_size
    k1, k2, k3, k4 = jax.random.split(key, 4)

    # node coordinates
    nodes = jax.random.uniform(k1, (N, C), jnp.float32)

    # random symmetric adjacency; weighted edges = Euclidean distance, inf where no edge
    a = (jax.random.uniform(k2, (N, N)) < 0.08).astype(jnp.float32)
    adj = jnp.maximum(a, a.T)
    dist = jnp.sqrt(jnp.sum((nodes[:, None, :] - nodes[None, :, :]) ** 2, axis=-1) + 1e-12)
    weighted_adj = jnp.where(adj > 0, dist, jnp.inf).astype(jnp.float32)

    # deterministic encoder parameters (Linear(C->E), Linear(E->1), PyTorch (out,in) layout)
    w1 = 0.1 * jax.random.normal(k3, (E, C), jnp.float32)
    b1 = jnp.zeros((E,), jnp.float32)
    w2 = 0.1 * jax.random.normal(k4, (1, E), jnp.float32)
    b2 = jnp.zeros((1,), jnp.float32)

    start_index, goal_index = 0, 7
    histories, path_maps = heuristic_neural_astar(
        start_index, goal_index, nodes, adj, weighted_adj, w1, b1, w2, b2,
        g_ratio=0.5, Tmax=0.25)
    jax.block_until_ready((histories, path_maps))
    print("KERNEL_OK")
</pallas_src>

<mosaic_0001>
module attributes {stable_mosaic.version = 11 : i64} {
  func.func @_neural_astar_kernel(%arg0: memref<1xi32, #tpu.memory_space<smem>>, %arg1: memref<1xi32, #tpu.memory_space<smem>>, %arg2: memref<1x128xf32, #tpu.memory_space<vmem>>, %arg3: memref<128xf32, #tpu.memory_space<smem>>, %arg4: memref<1x128xf32, #tpu.memory_space<vmem>>, %arg5: memref<128x128xf32, #tpu.memory_space<vmem>>, %arg6: memref<1x128xf32, #tpu.memory_space<vmem>>, %arg7: memref<1x128xi32, #tpu.memory_space<vmem>>) attributes {dimension_semantics = [], scalar_prefetch = 0 : i64, scratch_operands = 0 : i64, tpu.core_type = #tpu.core_type<tc>} {
    %0 = tpu.iota {dimensions = array<i32: 1>} : vector<1x128xi32>
    %c0 = arith.constant 0 : index
    %1 = memref.load %arg0[%c0] : memref<1xi32, #tpu.memory_space<smem>>
    %c0_0 = arith.constant 0 : index
    %2 = memref.load %arg1[%c0_0] : memref<1xi32, #tpu.memory_space<smem>>
    %c0_1 = arith.constant 0 : index
    %c0_2 = arith.constant 0 : index
    %3 = vector.load %arg2[%c0_1, %c0_2] : memref<1x128xf32, #tpu.memory_space<vmem>>, vector<1x128xf32>
    %4 = vector.broadcast %1 : i32 to vector<1x128xi32>
    %5 = arith.cmpi eq, %0, %4 : vector<1x128xi32>
    %6 = arith.extui %5 : vector<1x128xi1> to vector<1x128xi32>
    %7 = arith.sitofp %6 : vector<1x128xi32> to vector<1x128xf32>
    %cst = arith.constant 0.000000e+00 : f32
    %8 = vector.broadcast %cst : f32 to vector<1x128xf32>
    %c0_3 = arith.constant 0 : index
    %c0_4 = arith.constant 0 : index
    %9 = vector.load %arg4[%c0_3, %c0_4] : memref<1x128xf32, #tpu.memory_space<vmem>>, vector<1x128xf32>
    %10 = vector.broadcast %2 : i32 to vector<1x128xi32>
    %c0_i32 = arith.constant 0 : i32
    %c0_i32_5 = arith.constant 0 : i32
    %11:6 = scf.while (%arg8 = %c0_i32, %arg9 = %7, %arg10 = %8, %arg11 = %9, %arg12 = %10, %arg13 = %c0_i32_5) : (i32, vector<1x128xf32>, vector<1x128xf32>, vector<1x128xf32>, vector<1x128xi32>, i32) -> (i32, vector<1x128xf32>, vector<1x128xf32>, vector<1x128xf32>, vector<1x128xi32>, i32) {
      %c32_i32 = arith.constant 32 : i32
      %25 = arith.cmpi slt, %arg8, %c32_i32 : i32
      %c0_i32_13 = arith.constant 0 : i32
      %26 = arith.cmpi eq, %arg13, %c0_i32_13 : i32
      %27 = arith.andi %25, %26 : i1
      scf.condition(%27) %arg8, %arg9, %arg10, %arg11, %arg12, %arg13 : i32, vector<1x128xf32>, vector<1x128xf32>, vector<1x128xf32>, vector<1x128xi32>, i32
    } do {
    ^bb0(%arg8: i32, %arg9: vector<1x128xf32>, %arg10: vector<1x128xf32>, %arg11: vector<1x128xf32>, %arg12: vector<1x128xi32>, %arg13: i32):
      %cst_13 = arith.constant 5.000000e-01 : f32
      %25 = vector.broadcast %cst_13 : f32 to vector<1x128xf32>
      %26 = arith.mulf %25, %arg11 : vector<1x128xf32>
      %cst_14 = arith.constant 5.000000e-01 : f32
      %27 = vector.broadcast %cst_14 : f32 to vector<1x128xf32>
      %28 = arith.mulf %27, %3 : vector<1x128xf32>
      %29 = arith.addf %26, %28 : vector<1x128xf32>
      %cst_15 = arith.constant 5.000000e-01 : f32
      %30 = vector.broadcast %cst_15 : f32 to vector<1x128xf32>
      %31 = arith.cmpf ogt, %arg9, %30 : vector<1x128xf32>
      %cst_16 = arith.constant 0x7F800000 : f32
      %32 = vector.broadcast %cst_16 : f32 to vector<1x128xf32>
      %33 = arith.select %31, %29, %32 : vector<1x128xi1>, vector<1x128xf32>
      %34 = vector.shape_cast %33 : vector<1x128xf32> to vector<1x1x128xf32>
      %cst_17 = arith.constant dense<0x7F800000> : vector<1xf32>
      %35 = vector.multi_reduction <minimumf>, %34, %cst_17 [1, 2] : vector<1x1x128xf32> to vector<1xf32>
      %36 = vector.shape_cast %35 : vector<1xf32> to vector<1x1x1xf32>
      %37 = vector.extract %36[0, 0, 0] : f32 from vector<1x1x1xf32>
      %38 = vector.broadcast %37 : f32 to vector<1x128xf32>
      %39 = arith.cmpf ole, %33, %38 : vector<1x128xf32>
      %c127_i32 = arith.constant 127 : i32
      %40 = vector.broadcast %c127_i32 : i32 to vector<1x128xi32>
      %41 = arith.select %39, %0, %40 : vector<1x128xi1>, vector<1x128xi32>
      %42 = vector.shape_cast %41 : vector<1x128xi32> to vector<1x1x128xi32>
      %cst_18 = arith.constant dense<2147483647> : vector<1xi32>
      %43 = vector.multi_reduction <minsi>, %42, %cst_18 [1, 2] : vector<1x1x128xi32> to vector<1xi32>
      %44 = vector.shape_cast %43 : vector<1xi32> to vector<1x1x1xi32>
      %45 = vector.extract %44[0, 0, 0] : i32 from vector<1x1x1xi32>
      %46 = arith.cmpi eq, %45, %2 : i32
      %47 = arith.extui %46 : i1 to i32
      %48 = vector.broadcast %45 : i32 to vector<1x128xi32>
      %49 = arith.cmpi eq, %0, %48 : vector<1x128xi32>
      %cst_19 = arith.constant 0.000000e+00 : f32
      %50 = vector.broadcast %cst_19 : f32 to vector<1x128xf32>
      %51 = arith.select %49, %50, %arg9 : vector<1x128xi1>, vector<1x128xf32>
      %cst_20 = arith.constant 1.000000e+00 : f32
      %52 = vector.broadcast %cst_20 : f32 to vector<1x128xf32>
      %53 = arith.select %49, %52, %arg10 : vector<1x128xi1>, vector<1x128xf32>
      %54 = arith.index_cast %45 : i32 to index
      %55 = memref.load %arg3[%54] : memref<128xf32, #tpu.memory_space<smem>>
      %cst_21 = arith.constant 5.000000e-01 : f32
      %56 = arith.mulf %cst_21, %55 : f32
      %57 = arith.subf %37, %56 : f32
      %cst_22 = arith.constant 2.000000e+00 : f32
      %58 = arith.mulf %57, %cst_22 : f32
      %59 = arith.index_cast %45 : i32 to index
      %c0_23 = arith.constant 0 : index
      %60 = vector.load %arg5[%59, %c0_23] : memref<128x128xf32, #tpu.memory_space<vmem>>, vector<1x128xf32>
      %cst_24 = arith.constant 1.000000e+00 : f32
      %61 = vector.broadcast %cst_24 : f32 to vector<1x128xf32>
      %62 = arith.subf %61, %51 : vector<1x128xf32>
      %cst_25 = arith.constant 1.000000e+00 : f32
      %63 = vector.broadcast %cst_25 : f32 to vector<1x128xf32>
      %64 = arith.subf %63, %53 : vector<1x128xf32>
      %65 = arith.mulf %62, %64 : vector<1x128xf32>
      %cst_26 = arith.constant 0.000000e+00 : f32
      %66 = vector.broadcast %cst_26 : f32 to vector<1x128xf32>
      %67 = arith.cmpf ogt, %60, %66 : vector<1x128xf32>
      %68 = arith.extui %67 : vector<1x128xi1> to vector<1x128xi32>
      %69 = arith.sitofp %68 : vector<1x128xi32> to vector<1x128xf32>
      %70 = arith.mulf %69, %65 : vector<1x128xf32>
      %71 = vector.broadcast %58 : f32 to vector<1x128xf32>
      %72 = arith.addf %71, %60 : vector<1x128xf32>
      %73 = arith.cmpf ogt, %arg11, %72 : vector<1x128xf32>
      %74 = arith.extui %73 : vector<1x128xi1> to vector<1x128xi32>
      %75 = arith.sitofp %74 : vector<1x128xi32> to vector<1x128xf32>
      %76 = arith.mulf %51, %75 : vector<1x128xf32>
      %77 = arith.addf %65, %76 : vector<1x128xf32>
      %78 = arith.mulf %77, %70 : vector<1x128xf32>
      %cst_27 = arith.constant 5.000000e-01 : f32
      %79 = vector.broadcast %cst_27 : f32 to vector<1x128xf32>
      %80 = arith.cmpf ogt, %78, %79 : vector<1x128xf32>
      %81 = arith.select %80, %72, %arg11 : vector<1x128xi1>, vector<1x128xf32>
      %82 = arith.maximumf %51, %78 : vector<1x128xf32>
      %83 = vector.broadcast %45 : i32 to vector<1x128xi32>
      %84 = arith.select %80, %83, %arg12 : vector<1x128xi1>, vector<1x128xi32>
      %c1_i32_28 = arith.constant 1 : i32
      %85 = arith.addi %arg8, %c1_i32_28 : i32
      scf.yield %85, %82, %53, %81, %84, %47 : i32, vector<1x128xf32>, vector<1x128xf32>, vector<1x128xf32>, vector<1x128xi32>, i32
    }
    %c1_i32 = arith.constant 1 : i32
    %12 = arith.subi %11#0, %c1_i32 : i32
    %c0_i32_6 = arith.constant 0 : i32
    %13 = arith.maxsi %12, %c0_i32_6 : i32
    %14 = vector.broadcast %2 : i32 to vector<1x128xi32>
    %15 = arith.cmpi eq, %0, %14 : vector<1x128xi32>
    %16 = arith.extui %15 : vector<1x128xi1> to vector<1x128xi32>
    %17 = arith.muli %11#4, %16 : vector<1x128xi32>
    %18 = vector.shape_cast %17 : vector<1x128xi32> to vector<1x1x128xi32>
    %cst_7 = arith.constant dense<0> : vector<1xi32>
    %19 = vector.multi_reduction <add>, %18, %cst_7 [1, 2] : vector<1x1x128xi32> to vector<1xi32>
    %20 = vector.shape_cast %19 : vector<1xi32> to vector<1x1x1xi32>
    %21 = vector.extract %20[0, 0, 0] : i32 from vector<1x1x1xi32>
    %c0_i32_8 = arith.constant 0 : i32
    %22:3 = scf.while (%arg8 = %c0_i32_8, %arg9 = %16, %arg10 = %21) : (i32, vector<1x128xi32>, i32) -> (i32, vector<1x128xi32>, i32) {
      %25 = arith.cmpi slt, %arg8, %13 : i32
      scf.condition(%25) %arg8, %arg9, %arg10 : i32, vector<1x128xi32>, i32
    } do {
    ^bb0(%arg8: i32, %arg9: vector<1x128xi32>, %arg10: i32):
      %25 = vector.broadcast %arg10 : i32 to vector<1x128xi32>
      %26 = arith.cmpi eq, %0, %25 : vector<1x128xi32>
      %c1_i32_13 = arith.constant 1 : i32
      %27 = vector.broadcast %c1_i32_13 : i32 to vector<1x128xi32>
      %28 = arith.select %26, %27, %arg9 : vector<1x128xi1>, vector<1x128xi32>
      %c0_i32_14 = arith.constant 0 : i32
      %29 = vector.broadcast %c0_i32_14 : i32 to vector<1x128xi32>
      %30 = arith.select %26, %11#4, %29 : vector<1x128xi1>, vector<1x128xi32>
      %31 = vector.shape_cast %30 : vector<1x128xi32> to vector<1x1x128xi32>
      %cst_15 = arith.constant dense<0> : vector<1xi32>
      %32 = vector.multi_reduction <add>, %31, %cst_15 [1, 2] : vector<1x1x128xi32> to vector<1xi32>
      %33 = vector.shape_cast %32 : vector<1xi32> to vector<1x1x1xi32>
      %34 = vector.extract %33[0, 0, 0] : i32 from vector<1x1x1xi32>
      %c1_i32_16 = arith.constant 1 : i32
      %35 = arith.addi %arg8, %c1_i32_16 : i32
      scf.yield %35, %28, %34 : i32, vector<1x128xi32>, i32
    }
    %c0_9 = arith.constant 0 : index
    %c0_10 = arith.constant 0 : index
    %23 = vector.load %arg6[%c0_9, %c0_10] : memref<1x128xf32, #tpu.memory_space<vmem>>, vector<1x128xf32>
    tpu.vector_store %arg6[%c0_9, %c0_10], %11#2 {strides = array<i32>} : memref<1x128xf32, #tpu.memory_space<vmem>>, vector<1x128xf32>,
    %c0_11 = arith.constant 0 : index
    %c0_12 = arith.constant 0 : index
    %24 = vector.load %arg7[%c0_11, %c0_12] : memref<1x128xi32, #tpu.memory_space<vmem>>, vector<1x128xi32>
    tpu.vector_store %arg7[%c0_11, %c0_12], %22#1 {strides = array<i32>} : memref<1x128xi32, #tpu.memory_space<vmem>>, vector<1x128xi32>,
    return
  }
}

</mosaic_0001>

<llo_original>
// kernel: tpu_custom_call.1
$region0: #{tpu_custom_call.1}
  #allocation0 [shape = 'u32[]', space=smem, size = 0x4, offset = 0x4, fixed_abs, tag = 'smem constant byte address 0x4 - core index']
  #allocation1 [shape = 'u32[144,128]{1,0:T(1,128)}', space=vmem, size = 0x12000, scoped, tag = 'internal scratch']
  #allocation2 [shape = 's32[1]{0:T(128)S(6)}', space=smem, size = 0x200, scoped, tag = 'scoped memory for tpu_custom_call.1']
  #allocation3 [shape = 's32[1]{0:T(128)S(6)}', space=smem, size = 0x200, scoped, tag = 'scoped memory for tpu_custom_call.1']
  %s0 = inlined_call_operand.<no memory space> [shape: s32[1], index: 0, kind: input, shape index: {}]
  %s1 = inlined_call_operand.<no memory space> [shape: s32[1], index: 1, kind: input, shape index: {}]
  %s2 = inlined_call_operand.vmem [shape: f32[1,128], index: 2, kind: input, shape index: {}]
  %s3 = inlined_call_operand.vmem [shape: f32[128], index: 3, kind: input, shape index: {}]
  %s4 = inlined_call_operand.vmem [shape: f32[1,128], index: 4, kind: input, shape index: {}]
  %s5 = inlined_call_operand.hbm [shape: f32[128,128], index: 5, kind: input, shape index: {}]
  %s6 = inlined_call_operand.hbm [shape: f32[1,128], index: 6, kind: output, shape index: {0}]
  %s7 = inlined_call_operand.hbm [shape: s32[1,128], index: 7, kind: output, shape index: {1}]
  %8 = xla_tuple %s6, %s7
  %s9 = sld [smem:[#allocation0]]
  $region64: #{tpu_custom_call.1} parent=0
    _
  %s11 = ssub.s32 1, %s9
  %s12 = scalar_select 0, %s11, %s9
  %13 = sst [smem:[#allocation2]] %s0
  %14 = sst [smem:[#allocation3]] %s1
  $region1: #{tpu_custom_call.1} parent=0
    #allocation4 [shape = 'u8[512]{0}', space=smem, size = 0x200, scoped, tag = 'input window, operand 3, single buffered']
    #allocation5 [shape = 's32[1]{0}', space=sflag, size = 0x4, scoped, tag = 'scoped memory for tpu_custom_call.1']
    #allocation6 [shape = 's32[1]{0}', space=sflag, size = 0x4, scoped, tag = 'scoped memory for tpu_custom_call.1']
    #allocation7 [shape = 's32[1]{0}', space=sflag, size = 0x4, scoped, tag = 'scoped memory for tpu_custom_call.1']
    #allocation8 [shape = 'u8[65536]{0}', space=vmem, size = 0x10000, scoped, tag = 'input window, operand 5, single buffered']
    #allocation9 [shape = 'u8[512]{0}', space=vmem, size = 0x400, scoped, tag = 'output window, operand 0, single buffered']
    #allocation10 [shape = 'u8[512]{0}', space=vmem, size = 0x400, scoped, tag = 'output window, operand 1, single buffered']
    #allocation11 [shape = 's32[1]{0}', space=sflag, size = 0x4, scoped, tag = 'scoped memory for tpu_custom_call.1']
    %15 = vsyncpa [#allocation7], 0
    %16 = vsyncpa [#allocation5], 0
    %17 = vsyncpa [#allocation6], 0
    %18 = vsyncpa [#allocation11], 0
    // Predicated region
    $region2: #{tpu_custom_call.1} parent=1 // pred_check
      _
    $region3: #{tpu_custom_call.1} parent=1 // pred_check_branch
      %20 = sbr.rel (0) target = $region5
    $region4: #{tpu_custom_call.1} parent=1 // pred_region
      _
    $region5: #{tpu_custom_call.1} parent=1 // pred_fallthru
      _
    // Predicated region
    $region6: #{tpu_custom_call.1} parent=1 // pred_check
      _
    $region7: #{tpu_custom_call.1} parent=1 // pred_check_branch
      %22 = sbr.rel (0) target = $region9
    $region8: #{tpu_custom_call.1} parent=1 // pred_region
      _
    $region9: #{tpu_custom_call.1} parent=1 // pred_fallthru
      _
    // Predicated region
    $region10: #{tpu_custom_call.1} parent=1 // pred_check
      _
    $region11: #{tpu_custom_call.1} parent=1 // pred_check_branch
      %24 = sbr.rel (0) target = $region13
    $region12: #{tpu_custom_call.1} parent=1 // pred_region
      _
    $region13: #{tpu_custom_call.1} parent=1 // pred_fallthru
      _
    // Predicated region
    $region14: #{tpu_custom_call.1} parent=1 // pred_check
      _
    $region15: #{tpu_custom_call.1} parent=1 // pred_check_branch
      %26 = sbr.rel (0) target = $region17
    $region16: #{tpu_custom_call.1} parent=1 // pred_region
      %s28 = ssub.s32 16, 16
      %29 = vsyncadd [#allocation7], %s28
      %s31 = sshll.u32 %s3, 4
      %s32 = int_to_ptr.vmem [resolvable:$true] %s31
      %34 = dma.vmem_to_smem %s32, 16, [#allocation4], [#allocation7]
    $region17: #{tpu_custom_call.1} parent=1 // pred_fallthru
      _
    // Predicated region
    $region18: #{tpu_custom_call.1} parent=1 // pred_check
      _
    $region19: #{tpu_custom_call.1} parent=1 // pred_check_branch
      %36 = sbr.rel (0) target = $region21
    $region20: #{tpu_custom_call.1} parent=1 // pred_region
      _
    $region21: #{tpu_custom_call.1} parent=1 // pred_fallthru
      _
    // Predicated region
    $region22: #{tpu_custom_call.1} parent=1 // pred_check
      _
    $region23: #{tpu_custom_call.1} parent=1 // pred_check_branch
      %38 = sbr.rel (0) target = $region25
    $region24: #{tpu_custom_call.1} parent=1 // pred_region
      %s40 = ssub.s32 2048, 2048
      %41 = vsyncadd [#allocation5], %s40
      %s42 = sshll.u32 [#allocation8], 4
      %s43 = int_to_ptr.vmem [resolvable:$true] %s42
      %48 = dma.hbm_to_vmem [thread:$0]  %s5, 2048, %s43, [#allocation5], 128, 128, 8
    $region25: #{tpu_custom_call.1} parent=1 // pred_fallthru
      _
    // Predicated region
    $region26: #{tpu_custom_call.1} parent=1 // pred_check
      _
    $region27: #{tpu_custom_call.1} parent=1 // pred_check_branch
      %50 = sbr.rel (0) target = $region29
    $region28: #{tpu_custom_call.1} parent=1 // pred_region
      %51 = dma.done [#allocation7], 16
    $region29: #{tpu_custom_call.1} parent=1 // pred_fallthru
      _
    // Predicated region
    $region30: #{tpu_custom_call.1} parent=1 // pred_check
      _
    $region31: #{tpu_custom_call.1} parent=1 // pred_check_branch
      %53 = sbr.rel (0) target = $region33
    $region32: #{tpu_custom_call.1} parent=1 // pred_region
      %54 = dma.done [#allocation5], 2048
    $region33: #{tpu_custom_call.1} parent=1 // pred_fallthru
      _
    %55 = sfence
    %v56 = vlaneseq
    %v57 = vand.u32 %v56, 127
    %s58 = sld [smem:[#allocation2]]
    %s59 = sld [smem:[#allocation3]]
    %v60 = vld [vmem:[%s2] sm:$0x1]
    %v61 = vstv %s58
    %vm62 = vcmp.eq.s32.totalorder %v57, %v61
    %v63 = vsel %vm62, 1, 0
    %v64 = vcvt.s32.f32 %v63
    %v65 = vld [vmem:[%s4] sm:$0x1]
    %v66 = vstv %s59
    // While loop
    $region34: #{tpu_custom_call.1} parent=1 // loop_pre_header
      _
    $region35: #{tpu_custom_call.1} parent=1 // loop_header
      %s68 = sphi 0, %s155
      %v69 = vphi %v64, %v153
      %v70 = vphi 0.0, %v129
      %v71 = vphi %v65, %v152
      %v72 = vphi %v66, %v154
      %s73 = sphi 0, %s125
      %p74 = scmp.lt.s32.totalorder %s68, 32
      %p75 = scmp.eq.s32.totalorder %s73, 0
      %p76 = pnand %p74, %p75
      %p77 = pneg %p76
    $region36: #{tpu_custom_call.1} parent=1 // loop_header_branch
      %79 = sbr.rel (%p76) target = $region40
    $region37: #{tpu_custom_call.1} parent=1 // loop_body
      %v80 = vmul.f32 %v71, 0.5
      %v81 = vmul.f32 %v60, 0.5
      %v82 = vadd.f32 %v80, %v81
      %vm83 = vcmp.gt.f32.partialorder %v69, 0.5
      %v84 = vsel %vm83, %v82, inf
      %vm85 = vcmask 1040384
      %v86 = vsel %vm85, %v84, inf
      %87 = vmin.xlane.f32.xlu0 %v86
      %v88 = vpop.xlane.xlu0 %87
      %v89 = vrot.slane %v88, 4
      %v90 = vmin.f32 %v88, %v89
      %v91 = vrot.slane %v90, 2
      %v92 = vmin.f32 %v90, %v91
      %v93 = vrot.slane %v92, 1
      %v94 = vmin.f32 %v92, %v93
      %s95 = vtos %v94
      %v96 = vstv %s95
      %vm97 = vcmp.le.f32.partialorder %v84, %v96
      %v98 = vsel %vm97, %v57, 127
      %v99 = vsel %vm85, %v98, 2147483647
      %v100 = vand.u32 %v99, 65535
      %v101 = vshra.s32 %v99, 16
      %v102 = vcvt.s32.f32 %v100
      %v103 = vcvt.s32.f32 %v101
      %104 = vmin.xlane.f32.xlu0 %v103
      %v105 = vpop.xlane.xlu0 %104
      %vm106 = vcmp.eq.f32.partialorder %v103, %v105
      %v107 = vsel %vm106, %v102, inf
      %108 = vmin.xlane.f32.xlu0 %v107
      %v109 = vpop.xlane.xlu0 %108
      %v110 = vcvt.f32.s32 %v109
      %v111 = vcvt.f32.s32 %v105
      %v112 = vshll.u32 %v111, 16
      %v113 = vadd.s32 %v112, %v110
      %v114 = vrot.slane %v113, 4
      %vm115 = vcmp.lt.s32.totalorder %v113, %v114
      %v116 = vsel %vm115, %v113, %v114
      %v117 = vrot.slane %v116, 2
      %vm118 = vcmp.lt.s32.totalorder %v116, %v117
      %v119 = vsel %vm118, %v116, %v117
      %v120 = vrot.slane %v119, 1
      %vm121 = vcmp.lt.s32.totalorder %v119, %v120
      %v122 = vsel %vm121, %v119, %v120
      %s123 = vtos %v122
      %p124 = scmp.eq.s32.totalorder %s123, %s59
      %s125 = scalar_select %p124, 1, 0
      %v126 = vstv %s123
      %vm127 = vcmp.eq.s32.totalorder %v57, %v126
      %v128 = vsel %vm127, 0.0, %v69
      %v129 = vsel %vm127, 1.0, %v70
      %s130 = sld [smem:[#allocation4 + %s123]]
      %s131 = smul.f32 %s130, 0.5
      %s132 = ssub.f32 %s95, %s131
      %s133 = smul.f32 %s132, 2.0
      %s134 = scalar_lea.vmem [#allocation8], %s123
      %v135 = vld [vmem:[%s134] sm:$0x1]
      %v136 = vsub.f32 1.0, %v128
      %v137 = vsub.f32 1.0, %v129
      %v138 = vmul.f32 %v136, %v137
      %vm139 = vcmp.gt.f32.partialorder %v135, 0.0
      %v140 = vsel %vm139, 1, 0
      %v141 = vcvt.s32.f32 %v140
      %v142 = vmul.f32 %v141, %v138
      %v143 = vstv %s133
      %v144 = vadd.f32 %v143, %v135
      %vm145 = vcmp.gt.f32.partialorder %v71, %v144
      %v146 = vsel %vm145, 1, 0
      %v147 = vcvt.s32.f32 %v146
      %v148 = vmul.f32 %v128, %v147
      %v149 = vadd.f32 %v138, %v148
      %v150 = vmul.f32 %v149, %v142
      %vm151 = vcmp.gt.f32.partialorder %v150, 0.5
      %v152 = vsel %vm151, %v144, %v71
      %v153 = vmax.f32 %v128, %v150
      %v154 = vsel %vm151, %v126, %v72
      %s155 = sadd.s32 %s68, 1
    $region38: #{tpu_custom_call.1} parent=1 // loop_footer
      _
    $region39: #{tpu_custom_call.1} parent=1 // loop_footer_branch
      %67 = sbr.rel target = $region35
    $region40: #{tpu_custom_call.1} parent=1 // loop_exit
      _
    %s156 = ssub.s32 %s68, 1
    %p157 = scmp.gt.s32.totalorder %s156, 0
    %s158 = scalar_select %p157, %s156, 0
    %vm159 = vcmp.eq.s32.totalorder %v57, %v66
    %v160 = vsel %vm159, 1, 0
    %v161 = vmul.u32 %v72, %v160
    %vm162 = vcmask 1040384
    %v163 = vsel %vm162, %v161, 0
    %v164 = vand.u32 %v163, 65535
    %v165 = vshrl.u32 %v163, 16
    %v166 = vcvt.s32.f32 %v164
    %v167 = vcvt.s32.f32 %v165
    %168 = vadd.xlane.f32.xlu0 %v166
    %v169 = vpop.xlane.xlu0 %168
    %170 = vadd.xlane.f32.xlu0 %v167
    %v171 = vpop.xlane.xlu0 %170
    %v172 = vcvt.f32.s32 %v169
    %v173 = vcvt.f32.s32 %v171
    %v174 = vshll.u32 %v173, 16
    %v175 = vadd.s32 %v174, %v172
    %v176 = vrot.slane %v175, 4
    %v177 = vadd.s32 %v175, %v176
    %v178 = vrot.slane %v177, 2
    %v179 = vadd.s32 %v177, %v178
    %v180 = vrot.slane %v179, 1
    %v181 = vadd.s32 %v179, %v180
    %s182 = vtos %v181
    // While loop
    $region41: #{tpu_custom_call.1} parent=1 // loop_pre_header
      _
    $region42: #{tpu_custom_call.1} parent=1 // loop_header
      %s184 = sphi 0, %s215
      %v185 = vphi %v160, %v193
      %s186 = sphi %s182, %s214
      %p187 = scmp.lt.s32.totalorder %s184, %s158
      %p188 = pneg %p187
    $region43: #{tpu_custom_call.1} parent=1 // loop_header_branch
      %190 = sbr.rel (%p188) target = $region47
    $region44: #{tpu_custom_call.1} parent=1 // loop_body
      %v191 = vstv %s186
      %vm192 = vcmp.eq.s32.totalorder %v57, %v191
      %v193 = vsel %vm192, 1, %v185
      %v194 = vsel %vm192, %v72, 0
      %v195 = vsel %vm162, %v194, 0
      %v196 = vand.u32 %v195, 65535
      %v197 = vshrl.u32 %v195, 16
      %v198 = vcvt.s32.f32 %v196
      %v199 = vcvt.s32.f32 %v197
      %200 = vadd.xlane.f32.xlu0 %v198
      %v201 = vpop.xlane.xlu0 %200
      %202 = vadd.xlane.f32.xlu0 %v199
      %v203 = vpop.xlane.xlu0 %202
      %v204 = vcvt.f32.s32 %v201
      %v205 = vcvt.f32.s32 %v203
      %v206 = vshll.u32 %v205, 16
      %v207 = vadd.s32 %v206, %v204
      %v208 = vrot.slane %v207, 4
      %v209 = vadd.s32 %v207, %v208
      %v210 = vrot.slane %v209, 2
      %v211 = vadd.s32 %v209, %v210
      %v212 = vrot.slane %v211, 1
      %v213 = vadd.s32 %v211, %v212
      %s214 = vtos %v213
      %s215 = sadd.s32 %s184, 1
    $region45: #{tpu_custom_call.1} parent=1 // loop_footer
      _
    $region46: #{tpu_custom_call.1} parent=1 // loop_footer_branch
      %183 = sbr.rel target = $region42
    $region47: #{tpu_custom_call.1} parent=1 // loop_exit
      _
    %216 = vst [vmem:[#allocation9] sm:$0x1] %v70
    %217 = vst [vmem:[#allocation10] sm:$0x1] %v185
    // Predicated region
    $region48: #{tpu_custom_call.1} parent=1 // pred_check
      _
    $region49: #{tpu_custom_call.1} parent=1 // pred_check_branch
      %219 = sbr.rel (0) target = $region51
    $region50: #{tpu_custom_call.1} parent=1 // pred_region
      %s221 = ssub.s32 16, 16
      %222 = vsyncadd [#allocation6], %s221
      %s224 = sshll.u32 [#allocation9], 4
      %s225 = int_to_ptr.vmem [resolvable:$true] %s224
      %227 = dma.vmem_to_hbm [thread:$0]  %s225, 16, %s6, [#allocation6]
    $region51: #{tpu_custom_call.1} parent=1 // pred_fallthru
      _
    // Predicated region
    $region52: #{tpu_custom_call.1} parent=1 // pred_check
      _
    $region53: #{tpu_custom_call.1} parent=1 // pred_check_branch
      %229 = sbr.rel (0) target = $region55
    $region54: #{tpu_custom_call.1} parent=1 // pred_region
      %s231 = ssub.s32 16, 16
      %232 = vsyncadd [#allocation11], %s231
      %s234 = sshll.u32 [#allocation10], 4
      %s235 = int_to_ptr.vmem [resolvable:$true] %s234
      %237 = dma.vmem_to_hbm [thread:$0]  %s235, 16, %s7, [#allocation11]
    $region55: #{tpu_custom_call.1} parent=1 // pred_fallthru
      _
    // Predicated region
    $region56: #{tpu_custom_call.1} parent=1 // pred_check
      _
    $region57: #{tpu_custom_call.1} parent=1 // pred_check_branch
      %239 = sbr.rel (0) target = $region59
    $region58: #{tpu_custom_call.1} parent=1 // pred_region
      %240 = dma.done [#allocation6], 16
    $region59: #{tpu_custom_call.1} parent=1 // pred_fallthru
      _
    // Predicated region
    $region60: #{tpu_custom_call.1} parent=1 // pred_check
      _
    $region61: #{tpu_custom_call.1} parent=1 // pred_check_branch
      %242 = sbr.rel (0) target = $region63
    $region62: #{tpu_custom_call.1} parent=1 // pred_region
      %243 = dma.done [#allocation11], 16
    $region63: #{tpu_custom_call.1} parent=1 // pred_fallthru
      _
    %244 = vsyncpa [#allocation5], 1
    %245 = vsyncpa [#allocation6], 1
    %246 = vsyncpa [#allocation11], 1
    %247 = vsyncpa [#allocation7], 1

</llo_original>
